<compile_context>
chip_gen: v7x
topology: tpu7x:2x2x1
jax: 0.10.0
libtpu: 0.0.40
codegen_flags: <defaults>
</compile_context>

<pallas_src>
import functools

import jax
import jax.numpy as jnp
from jax.experimental import pallas as pl
from jax.experimental.pallas import tpu as pltpu


# Lanczos g=7, n=9 coefficients.
_LANCZOS = (
    0.99999999999980993,
    676.5203681218851,
    -1259.1392167224028,
    771.32342877765313,
    -176.61502916214059,
    12.507343278686905,
    -0.13857109526572012,
    9.9843695780195716e-6,
    1.5056327351493116e-7,
)
_HALF_LOG_2PI = 0.9189385332046727  # 0.5 * log(2*pi)


def _build_lanczos_rational():
    """Rewrite s(z) = c0 + sum_i c_i/(z+i-1) as N(v)/D(v) with v = 1/z.

    Since 1/(z+i-1) = v/(1+(i-1)v), with D(v) = prod_j (1+(j-1)v):
        s = [c0*D(v) + v*sum_i c_i * prod_{j!=i}(1+(j-1)v)] / D(v).
    Coefficients are accumulated here in float64; the kernel evaluates both
    polynomials by Horner in f32.  v = 1/z_shifted is in (0, 2], so no
    overflow even for huge arguments (unlike a direct P(z)/Q(z) form).
    """
    def pmul(a, b):
        out = [0.0] * (len(a) + len(b) - 1)
        for i, ai in enumerate(a):
            for k, bk in enumerate(b):
                out[i + k] += ai * bk
        return out

    def padd(a, b):
        n = max(len(a), len(b))
        return [(a[i] if i < len(a) else 0.0) + (b[i] if i < len(b) else 0.0)
                for i in range(n)]

    factors = [[1.0, float(j - 1)] for j in range(1, 9)]   # (1 + (j-1)*v)
    den = [1.0]
    for f in factors:
        den = pmul(den, f)
    num = [_LANCZOS[0] * d for d in den]
    for i in range(1, 9):
        prod = [1.0]
        for j in range(1, 9):
            if j != i:
                prod = pmul(prod, factors[j - 1])
        num = padd(num, [0.0] + [_LANCZOS[i] * p for p in prod])  # multiply by v
    while len(den) > 1 and den[-1] == 0.0:
        den.pop()
    while len(num) > 1 and num[-1] == 0.0:
        num.pop()
    # Descending order for Horner evaluation.
    return tuple(reversed(num)), tuple(reversed(den))


_LANCZOS_NUM, _LANCZOS_DEN = _build_lanczos_rational()


def _horner(coeffs_desc, v):
    acc = jnp.full_like(v, coeffs_desc[0])
    for c in coeffs_desc[1:]:
        acc = acc * v + c
    return acc


def _lgamma_pos(z, *, min_half=False, log_z=None):
    """log(Gamma(z)) for z > 0 (Lanczos g=7, n=9, rational form).

    min_half=True: caller guarantees z >= 0.5 so the recurrence branch is
    statically skipped.  log_z: optional precomputed log(z) reused by the
    small-argument branch (saves one EUP log).
    """
    if min_half:
        zz = z
    else:
        small = z < 0.5
        zz = jnp.where(small, z + 1.0, z)          # shift small args up by 1
    v = 1.0 / zz                                    # EUP divide #1
    s = _horner(_LANCZOS_NUM, v) / _horner(_LANCZOS_DEN, v)   # EUP divide #2
    t = zz + 6.5                                    # (zz - 1) + g + 0.5, g = 7
    lg = _HALF_LOG_2PI + (zz - 0.5) * jnp.log(t) - t + jnp.log(s)
    if min_half:
        return lg
    if log_z is None:
        log_z = jnp.log(z)
    # Gamma(z) = Gamma(z+1) / z  =>  lgamma(z) = lgamma(z+1) - log(z)
    return jnp.where(small, lg - log_z, lg)


def _zinb_block_kernel(a_ref, pi_ref, mu_ref, theta_ref, out_ref, *,
                       eps, scale_factor):
    A = a_ref[...].astype(jnp.float32)
    pi = pi_ref[...].astype(jnp.float32)
    mu = mu_ref[...].astype(jnp.float32)
    if scale_factor != 1.0:
        mu = mu * scale_factor
    theta = jnp.minimum(theta_ref[...].astype(jnp.float32), 1e6)

    # Shared logs (each used 2+ times below).
    theta_eps = theta + eps
    log_theta_eps = jnp.log(theta_eps)
    log_mu_eps = jnp.log(mu + eps)
    log_theta_mu_eps = jnp.log(theta + mu + eps)

    # ---- NBLoss (reduction='none') ----
    t1 = (_lgamma_pos(theta_eps, log_z=log_theta_eps)
          + _lgamma_pos(A + 1.0, min_half=True)        # A + 1 >= 1 always
          - _lgamma_pos(A + theta_eps))
    # log(1 + mu/(theta+eps)) == log(theta+mu+eps) - log(theta+eps)
    t2 = ((theta + A) * (log_theta_mu_eps - log_theta_eps)
          + A * (log_theta_eps - log_mu_eps))
    nb = jnp.nan_to_num(t1 + t2, nan=0.0)

    # ---- ZINB ----
    one_minus_pi = 1.0 - pi
    nonzero_zinb = nb - jnp.log(one_minus_pi + eps)
    # pow(theta/(theta+mu+eps), theta) == exp(theta*(log(theta+eps)-log(theta+mu+eps)))
    zero_nb = jnp.exp(theta * (log_theta_eps - log_theta_mu_eps))
    zero_zinb = -jnp.log(pi + one_minus_pi * zero_nb + eps)

    is_zero = A < 1e-6
    result = jnp.nan_to_num(jnp.where(is_zero, zero_zinb, nonzero_zinb),
                            nan=0.0)

    # Per-block partial reductions (3 instead of 4; nonzero count is derived
    # statically in the wrapper).  Final tiny combine happens in plain JAX.
    out_ref[0, 0] = jnp.sum(jnp.where(is_zero, result, 0.0))   # sum over zeros
    out_ref[0, 1] = jnp.sum(jnp.where(is_zero, 1.0, 0.0))      # zero count
    out_ref[0, 2] = jnp.sum(jnp.where(is_zero, 0.0, result))   # sum over nonzeros


def _pick_tile_rows(n_rows, n_cols, itemsize=4, target_block_bytes=512 * 1024):
    """Largest multiple of 8 dividing n_rows with block size <= ~target bytes."""
    cap_rows = max(8, target_block_bytes // (n_cols * itemsize))
    best = 8
    t = 8
    limit = min(n_rows, cap_rows)
    while t <= limit:
        if n_rows % t == 0:
            best = t
        t += 8
    return best


def zinb_loss_pallas(A, pi, mu, theta, *, eps=1e-10, scale_factor=1.0,
                     tile_rows=None):
    """ZINBLoss(reduction='mean', ridge_lambda=0.0) forward pass."""
    N, G = A.shape
    assert N % 8 == 0 and G % 128 == 0, "pick TPU-friendly (8,128)-aligned shapes"
    if tile_rows is None:
        tile_rows = _pick_tile_rows(N, G, itemsize=A.dtype.itemsize)
    assert N % tile_rows == 0
    num_blocks = N // tile_rows

    kernel = functools.partial(_zinb_block_kernel, eps=float(eps),
                               scale_factor=float(scale_factor))
    row_spec = pl.BlockSpec((tile_rows, G), lambda i: (i, 0))

    partials = pl.pallas_call(
        kernel,
        out_shape=jax.ShapeDtypeStruct((num_blocks, 3), jnp.float32),
        grid_spec=pltpu.PrefetchScalarGridSpec(
            num_scalar_prefetch=0,
            grid=(num_blocks,),
            in_specs=[row_spec, row_spec, row_spec, row_spec],
            out_specs=pl.BlockSpec((1, 3), lambda i: (i, 0),
                                   memory_space=pltpu.SMEM),
        ),
        compiler_params=pltpu.CompilerParams(
            dimension_semantics=("parallel",),
            vmem_limit_bytes=32 * 1024 * 1024),
    )(A, pi, mu, theta)

    sum_zero = jnp.sum(partials[:, 0])
    n_zero = jnp.sum(partials[:, 1])
    sum_nonzero = jnp.sum(partials[:, 2])
    n_nonzero = jnp.float32(N * G) - n_zero
    # reduction == 'mean':  sum_zero / n_zero + sum_nonzero / n_nonzero
    return sum_zero / n_zero + sum_nonzero / n_nonzero


def zinb_loss_ref(A, pi, mu, theta, *, eps=1e-10, scale_factor=1.0):
    """Pure-JAX reference mirroring the PyTorch module."""
    theta = jnp.minimum(theta, 1e6)
    mu_s = mu * scale_factor
    lgamma = jax.scipy.special.gammaln
    t1 = lgamma(theta + eps) + lgamma(A + 1.0) - lgamma(A + theta + eps)
    t2 = ((theta + A) * jnp.log(1.0 + mu_s / (theta + eps))
          + A * (jnp.log(theta + eps) - jnp.log(mu_s + eps)))
    nb = jnp.nan_to_num(t1 + t2, nan=0.0)
    nonzero_zinb = nb - jnp.log(1.0 - pi + eps)
    zero_nb = jnp.power(theta / (theta + mu_s + eps), theta)
    zero_zinb = -jnp.log(pi + (1.0 - pi) * zero_nb + eps)
    is_zero = A < 1e-6
    zmask = jnp.where(is_zero, 1.0, 0.0)
    nzmask = 1.0 - zmask
    result = jnp.nan_to_num(jnp.where(is_zero, zero_zinb, nonzero_zinb),
                            nan=0.0)
    return (jnp.sum(result * zmask) / jnp.sum(zmask)
            + jnp.sum(result * nzmask) / jnp.sum(nzmask))


if __name__ == "__main__":
    key = jax.random.PRNGKey(0)
    kA, kpi, kmu, kth = jax.random.split(key, 4)

    N, G = 16, 256  # cells x genes (small, TPU-aligned)
    # Count matrix with plenty of exact zeros so both mask branches are hit.
    A = jax.random.poisson(kA, lam=1.0, shape=(N, G)).astype(jnp.float32)
    pi = jax.nn.sigmoid(jax.random.normal(kpi, (N, G), jnp.float32))
    mu = jnp.exp(0.5 * jax.random.normal(kmu, (N, G), jnp.float32))
    theta = jnp.exp(0.5 * jax.random.normal(kth, (N, G), jnp.float32)) + 0.1

    out = jax.block_until_ready(zinb_loss_pallas(A, pi, mu, theta))
    ref = jax.block_until_ready(zinb_loss_ref(A, pi, mu, theta))
    assert jnp.allclose(out, ref, rtol=1e-4, atol=1e-4), (out, ref)

    print("KERNEL_OK")
</pallas_src>

<mosaic_0001>
module attributes {stable_mosaic.version = 11 : i64} {
  func.func @_zinb_block_kernel(%arg0: i32, %arg1: memref<16x256xf32, #tpu.memory_space<vmem>>, %arg2: memref<16x256xf32, #tpu.memory_space<vmem>>, %arg3: memref<16x256xf32, #tpu.memory_space<vmem>>, %arg4: memref<16x256xf32, #tpu.memory_space<vmem>>, %arg5: memref<1x3xf32, #tpu.memory_space<smem>>) attributes {dimension_semantics = [#tpu.dimension_semantics<parallel>], iteration_bounds = array<i64: 1>, scalar_prefetch = 0 : i64, scratch_operands = 0 : i64, tpu.core_type = #tpu.core_type<tc>, window_params = [{transform_indices = @transform_0, window_bounds = array<i64: 16, 256>}, {transform_indices = @transform_1, window_bounds = array<i64: 16, 256>}, {transform_indices = @transform_2, window_bounds = array<i64: 16, 256>}, {transform_indices = @transform_3, window_bounds = array<i64: 16, 256>}, {transform_indices = @transform_4, window_bounds = array<i64: 1, 3>}]} {
    %c0 = arith.constant 0 : index
    %c0_0 = arith.constant 0 : index
    %0 = vector.load %arg1[%c0, %c0_0] : memref<16x256xf32, #tpu.memory_space<vmem>>, vector<16x256xf32>
    %c0_1 = arith.constant 0 : index
    %c0_2 = arith.constant 0 : index
    %1 = vector.load %arg2[%c0_1, %c0_2] : memref<16x256xf32, #tpu.memory_space<vmem>>, vector<16x256xf32>
    %c0_3 = arith.constant 0 : index
    %c0_4 = arith.constant 0 : index
    %2 = vector.load %arg3[%c0_3, %c0_4] : memref<16x256xf32, #tpu.memory_space<vmem>>, vector<16x256xf32>
    %c0_5 = arith.constant 0 : index
    %c0_6 = arith.constant 0 : index
    %3 = vector.load %arg4[%c0_5, %c0_6] : memref<16x256xf32, #tpu.memory_space<vmem>>, vector<16x256xf32>
    %cst = arith.constant 1.000000e+06 : f32
    %4 = vector.broadcast %cst : f32 to vector<16x256xf32>
    %5 = arith.minimumf %3, %4 : vector<16x256xf32>
    %cst_7 = arith.constant 1.000000e-10 : f32
    %6 = vector.broadcast %cst_7 : f32 to vector<16x256xf32>
    %7 = arith.addf %5, %6 : vector<16x256xf32>
    %8 = math.log %7 : vector<16x256xf32>
    %cst_8 = arith.constant 1.000000e-10 : f32
    %9 = vector.broadcast %cst_8 : f32 to vector<16x256xf32>
    %10 = arith.addf %2, %9 : vector<16x256xf32>
    %11 = math.log %10 : vector<16x256xf32>
    %12 = arith.addf %5, %2 : vector<16x256xf32>
    %cst_9 = arith.constant 1.000000e-10 : f32
    %13 = vector.broadcast %cst_9 : f32 to vector<16x256xf32>
    %14 = arith.addf %12, %13 : vector<16x256xf32>
    %15 = math.log %14 : vector<16x256xf32>
    %cst_10 = arith.constant 5.000000e-01 : f32
    %16 = vector.broadcast %cst_10 : f32 to vector<16x256xf32>
    %17 = arith.cmpf olt, %7, %16 : vector<16x256xf32>
    %cst_11 = arith.constant 1.000000e+00 : f32
    %18 = vector.broadcast %cst_11 : f32 to vector<16x256xf32>
    %19 = arith.addf %7, %18 : vector<16x256xf32>
    %20 = arith.select %17, %19, %7 : vector<16x256xi1>, vector<16x256xf32>
    %cst_12 = arith.constant 1.000000e+00 : f32
    %21 = vector.broadcast %cst_12 : f32 to vector<16x256xf32>
    %22 = arith.divf %21, %20 : vector<16x256xf32>
    %cst_13 = arith.constant 3409662.75 : f32
    %23 = vector.broadcast %cst_13 : f32 to vector<16x256xf32>
    %24 = arith.mulf %23, %22 : vector<16x256xf32>
    %cst_14 = arith.constant 0x4A7E0D50 : f32
    %25 = vector.broadcast %cst_14 : f32 to vector<16x256xf32>
    %26 = arith.addf %24, %25 : vector<16x256xf32>
    %27 = arith.mulf %26, %22 : vector<16x256xf32>
    %cst_15 = arith.constant 2222880.5 : f32
    %28 = vector.broadcast %cst_15 : f32 to vector<16x256xf32>
    %29 = arith.addf %27, %28 : vector<16x256xf32>
    %30 = arith.mulf %29, %22 : vector<16x256xf32>
    %cst_16 = arith.constant 678289.688 : f32
    %31 = vector.broadcast %cst_16 : f32 to vector<16x256xf32>
    %32 = arith.addf %30, %31 : vector<16x256xf32>
    %33 = arith.mulf %32, %22 : vector<16x256xf32>
    %cst_17 = arith.constant 129347.258 : f32
    %34 = vector.broadcast %cst_17 : f32 to vector<16x256xf32>
    %35 = arith.addf %33, %34 : vector<16x256xf32>
    %36 = arith.mulf %35, %22 : vector<16x256xf32>
    %cst_18 = arith.constant 15784.8809 : f32
    %37 = vector.broadcast %cst_18 : f32 to vector<16x256xf32>
    %38 = arith.addf %36, %37 : vector<16x256xf32>
    %39 = arith.mulf %38, %22 : vector<16x256xf32>
    %cst_19 = arith.constant 1203.83423 : f32
    %40 = vector.broadcast %cst_19 : f32 to vector<16x256xf32>
    %41 = arith.addf %39, %40 : vector<16x256xf32>
    %42 = arith.mulf %41, %22 : vector<16x256xf32>
    %cst_20 = arith.constant 52.4583321 : f32
    %43 = vector.broadcast %cst_20 : f32 to vector<16x256xf32>
    %44 = arith.addf %42, %43 : vector<16x256xf32>
    %45 = arith.mulf %44, %22 : vector<16x256xf32>
    %cst_21 = arith.constant 1.000000e+00 : f32
    %46 = vector.broadcast %cst_21 : f32 to vector<16x256xf32>
    %47 = arith.addf %45, %46 : vector<16x256xf32>
    %cst_22 = arith.constant 5.040000e+03 : f32
    %48 = vector.broadcast %cst_22 : f32 to vector<16x256xf32>
    %49 = arith.mulf %48, %22 : vector<16x256xf32>
    %cst_23 = arith.constant 1.306800e+04 : f32
    %50 = vector.broadcast %cst_23 : f32 to vector<16x256xf32>
    %51 = arith.addf %49, %50 : vector<16x256xf32>
    %52 = arith.mulf %51, %22 : vector<16x256xf32>
    %cst_24 = arith.constant 1.313200e+04 : f32
    %53 = vector.broadcast %cst_24 : f32 to vector<16x256xf32>
    %54 = arith.addf %52, %53 : vector<16x256xf32>
    %55 = arith.mulf %54, %22 : vector<16x256xf32>
    %cst_25 = arith.constant 6.769000e+03 : f32
    %56 = vector.broadcast %cst_25 : f32 to vector<16x256xf32>
    %57 = arith.addf %55, %56 : vector<16x256xf32>
    %58 = arith.mulf %57, %22 : vector<16x256xf32>
    %cst_26 = arith.constant 1.960000e+03 : f32
    %59 = vector.broadcast %cst_26 : f32 to vector<16x256xf32>
    %60 = arith.addf %58, %59 : vector<16x256xf32>
    %61 = arith.mulf %60, %22 : vector<16x256xf32>
    %cst_27 = arith.constant 3.220000e+02 : f32
    %62 = vector.broadcast %cst_27 : f32 to vector<16x256xf32>
    %63 = arith.addf %61, %62 : vector<16x256xf32>
    %64 = arith.mulf %63, %22 : vector<16x256xf32>
    %cst_28 = arith.constant 2.800000e+01 : f32
    %65 = vector.broadcast %cst_28 : f32 to vector<16x256xf32>
    %66 = arith.addf %64, %65 : vector<16x256xf32>
    %67 = arith.mulf %66, %22 : vector<16x256xf32>
    %cst_29 = arith.constant 1.000000e+00 : f32
    %68 = vector.broadcast %cst_29 : f32 to vector<16x256xf32>
    %69 = arith.addf %67, %68 : vector<16x256xf32>
    %70 = arith.divf %47, %69 : vector<16x256xf32>
    %cst_30 = arith.constant 6.500000e+00 : f32
    %71 = vector.broadcast %cst_30 : f32 to vector<16x256xf32>
    %72 = arith.addf %20, %71 : vector<16x256xf32>
    %cst_31 = arith.constant 5.000000e-01 : f32
    %73 = vector.broadcast %cst_31 : f32 to vector<16x256xf32>
    %74 = arith.subf %20, %73 : vector<16x256xf32>
    %75 = math.log %72 : vector<16x256xf32>
    %76 = arith.mulf %74, %75 : vector<16x256xf32>
    %cst_32 = arith.constant 0.918938517 : f32
    %77 = vector.broadcast %cst_32 : f32 to vector<16x256xf32>
    %78 = arith.addf %77, %76 : vector<16x256xf32>
    %79 = arith.subf %78, %72 : vector<16x256xf32>
    %80 = math.log %70 : vector<16x256xf32>
    %81 = arith.addf %79, %80 : vector<16x256xf32>
    %82 = arith.subf %81, %8 : vector<16x256xf32>
    %83 = arith.select %17, %82, %81 : vector<16x256xi1>, vector<16x256xf32>
    %cst_33 = arith.constant 1.000000e+00 : f32
    %84 = vector.broadcast %cst_33 : f32 to vector<16x256xf32>
    %85 = arith.addf %0, %84 : vector<16x256xf32>
    %cst_34 = arith.constant 1.000000e+00 : f32
    %86 = vector.broadcast %cst_34 : f32 to vector<16x256xf32>
    %87 = arith.divf %86, %85 : vector<16x256xf32>
    %cst_35 = arith.constant 3409662.75 : f32
    %88 = vector.broadcast %cst_35 : f32 to vector<16x256xf32>
    %89 = arith.mulf %88, %87 : vector<16x256xf32>
    %cst_36 = arith.constant 0x4A7E0D50 : f32
    %90 = vector.broadcast %cst_36 : f32 to vector<16x256xf32>
    %91 = arith.addf %89, %90 : vector<16x256xf32>
    %92 = arith.mulf %91, %87 : vector<16x256xf32>
    %cst_37 = arith.constant 2222880.5 : f32
    %93 = vector.broadcast %cst_37 : f32 to vector<16x256xf32>
    %94 = arith.addf %92, %93 : vector<16x256xf32>
    %95 = arith.mulf %94, %87 : vector<16x256xf32>
    %cst_38 = arith.constant 678289.688 : f32
    %96 = vector.broadcast %cst_38 : f32 to vector<16x256xf32>
    %97 = arith.addf %95, %96 : vector<16x256xf32>
    %98 = arith.mulf %97, %87 : vector<16x256xf32>
    %cst_39 = arith.constant 129347.258 : f32
    %99 = vector.broadcast %cst_39 : f32 to vector<16x256xf32>
    %100 = arith.addf %98, %99 : vector<16x256xf32>
    %101 = arith.mulf %100, %87 : vector<16x256xf32>
    %cst_40 = arith.constant 15784.8809 : f32
    %102 = vector.broadcast %cst_40 : f32 to vector<16x256xf32>
    %103 = arith.addf %101, %102 : vector<16x256xf32>
    %104 = arith.mulf %103, %87 : vector<16x256xf32>
    %cst_41 = arith.constant 1203.83423 : f32
    %105 = vector.broadcast %cst_41 : f32 to vector<16x256xf32>
    %106 = arith.addf %104, %105 : vector<16x256xf32>
    %107 = arith.mulf %106, %87 : vector<16x256xf32>
    %cst_42 = arith.constant 52.4583321 : f32
    %108 = vector.broadcast %cst_42 : f32 to vector<16x256xf32>
    %109 = arith.addf %107, %108 : vector<16x256xf32>
    %110 = arith.mulf %109, %87 : vector<16x256xf32>
    %cst_43 = arith.constant 1.000000e+00 : f32
    %111 = vector.broadcast %cst_43 : f32 to vector<16x256xf32>
    %112 = arith.addf %110, %111 : vector<16x256xf32>
    %cst_44 = arith.constant 5.040000e+03 : f32
    %113 = vector.broadcast %cst_44 : f32 to vector<16x256xf32>
    %114 = arith.mulf %113, %87 : vector<16x256xf32>
    %cst_45 = arith.constant 1.306800e+04 : f32
    %115 = vector.broadcast %cst_45 : f32 to vector<16x256xf32>
    %116 = arith.addf %114, %115 : vector<16x256xf32>
    %117 = arith.mulf %116, %87 : vector<16x256xf32>
    %cst_46 = arith.constant 1.313200e+04 : f32
    %118 = vector.broadcast %cst_46 : f32 to vector<16x256xf32>
    %119 = arith.addf %117, %118 : vector<16x256xf32>
    %120 = arith.mulf %119, %87 : vector<16x256xf32>
    %cst_47 = arith.constant 6.769000e+03 : f32
    %121 = vector.broadcast %cst_47 : f32 to vector<16x256xf32>
    %122 = arith.addf %120, %121 : vector<16x256xf32>
    %123 = arith.mulf %122, %87 : vector<16x256xf32>
    %cst_48 = arith.constant 1.960000e+03 : f32
    %124 = vector.broadcast %cst_48 : f32 to vector<16x256xf32>
    %125 = arith.addf %123, %124 : vector<16x256xf32>
    %126 = arith.mulf %125, %87 : vector<16x256xf32>
    %cst_49 = arith.constant 3.220000e+02 : f32
    %127 = vector.broadcast %cst_49 : f32 to vector<16x256xf32>
    %128 = arith.addf %126, %127 : vector<16x256xf32>
    %129 = arith.mulf %128, %87 : vector<16x256xf32>
    %cst_50 = arith.constant 2.800000e+01 : f32
    %130 = vector.broadcast %cst_50 : f32 to vector<16x256xf32>
    %131 = arith.addf %129, %130 : vector<16x256xf32>
    %132 = arith.mulf %131, %87 : vector<16x256xf32>
    %cst_51 = arith.constant 1.000000e+00 : f32
    %133 = vector.broadcast %cst_51 : f32 to vector<16x256xf32>
    %134 = arith.addf %132, %133 : vector<16x256xf32>
    %135 = arith.divf %112, %134 : vector<16x256xf32>
    %cst_52 = arith.constant 6.500000e+00 : f32
    %136 = vector.broadcast %cst_52 : f32 to vector<16x256xf32>
    %137 = arith.addf %85, %136 : vector<16x256xf32>
    %cst_53 = arith.constant 5.000000e-01 : f32
    %138 = vector.broadcast %cst_53 : f32 to vector<16x256xf32>
    %139 = arith.subf %85, %138 : vector<16x256xf32>
    %140 = math.log %137 : vector<16x256xf32>
    %141 = arith.mulf %139, %140 : vector<16x256xf32>
    %cst_54 = arith.constant 0.918938517 : f32
    %142 = vector.broadcast %cst_54 : f32 to vector<16x256xf32>
    %143 = arith.addf %142, %141 : vector<16x256xf32>
    %144 = arith.subf %143, %137 : vector<16x256xf32>
    %145 = math.log %135 : vector<16x256xf32>
    %146 = arith.addf %144, %145 : vector<16x256xf32>
    %147 = arith.addf %83, %146 : vector<16x256xf32>
    %148 = arith.addf %0, %7 : vector<16x256xf32>
    %cst_55 = arith.constant 5.000000e-01 : f32
    %149 = vector.broadcast %cst_55 : f32 to vector<16x256xf32>
    %150 = arith.cmpf olt, %148, %149 : vector<16x256xf32>
    %cst_56 = arith.constant 1.000000e+00 : f32
    %151 = vector.broadcast %cst_56 : f32 to vector<16x256xf32>
    %152 = arith.addf %148, %151 : vector<16x256xf32>
    %153 = arith.select %150, %152, %148 : vector<16x256xi1>, vector<16x256xf32>
    %cst_57 = arith.constant 1.000000e+00 : f32
    %154 = vector.broadcast %cst_57 : f32 to vector<16x256xf32>
    %155 = arith.divf %154, %153 : vector<16x256xf32>
    %cst_58 = arith.constant 3409662.75 : f32
    %156 = vector.broadcast %cst_58 : f32 to vector<16x256xf32>
    %157 = arith.mulf %156, %155 : vector<16x256xf32>
    %cst_59 = arith.constant 0x4A7E0D50 : f32
    %158 = vector.broadcast %cst_59 : f32 to vector<16x256xf32>
    %159 = arith.addf %157, %158 : vector<16x256xf32>
    %160 = arith.mulf %159, %155 : vector<16x256xf32>
    %cst_60 = arith.constant 2222880.5 : f32
    %161 = vector.broadcast %cst_60 : f32 to vector<16x256xf32>
    %162 = arith.addf %160, %161 : vector<16x256xf32>
    %163 = arith.mulf %162, %155 : vector<16x256xf32>
    %cst_61 = arith.constant 678289.688 : f32
    %164 = vector.broadcast %cst_61 : f32 to vector<16x256xf32>
    %165 = arith.addf %163, %164 : vector<16x256xf32>
    %166 = arith.mulf %165, %155 : vector<16x256xf32>
    %cst_62 = arith.constant 129347.258 : f32
    %167 = vector.broadcast %cst_62 : f32 to vector<16x256xf32>
    %168 = arith.addf %166, %167 : vector<16x256xf32>
    %169 = arith.mulf %168, %155 : vector<16x256xf32>
    %cst_63 = arith.constant 15784.8809 : f32
    %170 = vector.broadcast %cst_63 : f32 to vector<16x256xf32>
    %171 = arith.addf %169, %170 : vector<16x256xf32>
    %172 = arith.mulf %171, %155 : vector<16x256xf32>
    %cst_64 = arith.constant 1203.83423 : f32
    %173 = vector.broadcast %cst_64 : f32 to vector<16x256xf32>
    %174 = arith.addf %172, %173 : vector<16x256xf32>
    %175 = arith.mulf %174, %155 : vector<16x256xf32>
    %cst_65 = arith.constant 52.4583321 : f32
    %176 = vector.broadcast %cst_65 : f32 to vector<16x256xf32>
    %177 = arith.addf %175, %176 : vector<16x256xf32>
    %178 = arith.mulf %177, %155 : vector<16x256xf32>
    %cst_66 = arith.constant 1.000000e+00 : f32
    %179 = vector.broadcast %cst_66 : f32 to vector<16x256xf32>
    %180 = arith.addf %178, %179 : vector<16x256xf32>
    %cst_67 = arith.constant 5.040000e+03 : f32
    %181 = vector.broadcast %cst_67 : f32 to vector<16x256xf32>
    %182 = arith.mulf %181, %155 : vector<16x256xf32>
    %cst_68 = arith.constant 1.306800e+04 : f32
    %183 = vector.broadcast %cst_68 : f32 to vector<16x256xf32>
    %184 = arith.addf %182, %183 : vector<16x256xf32>
    %185 = arith.mulf %184, %155 : vector<16x256xf32>
    %cst_69 = arith.constant 1.313200e+04 : f32
    %186 = vector.broadcast %cst_69 : f32 to vector<16x256xf32>
    %187 = arith.addf %185, %186 : vector<16x256xf32>
    %188 = arith.mulf %187, %155 : vector<16x256xf32>
    %cst_70 = arith.constant 6.769000e+03 : f32
    %189 = vector.broadcast %cst_70 : f32 to vector<16x256xf32>
    %190 = arith.addf %188, %189 : vector<16x256xf32>
    %191 = arith.mulf %190, %155 : vector<16x256xf32>
    %cst_71 = arith.constant 1.960000e+03 : f32
    %192 = vector.broadcast %cst_71 : f32 to vector<16x256xf32>
    %193 = arith.addf %191, %192 : vector<16x256xf32>
    %194 = arith.mulf %193, %155 : vector<16x256xf32>
    %cst_72 = arith.constant 3.220000e+02 : f32
    %195 = vector.broadcast %cst_72 : f32 to vector<16x256xf32>
    %196 = arith.addf %194, %195 : vector<16x256xf32>
    %197 = arith.mulf %196, %155 : vector<16x256xf32>
    %cst_73 = arith.constant 2.800000e+01 : f32
    %198 = vector.broadcast %cst_73 : f32 to vector<16x256xf32>
    %199 = arith.addf %197, %198 : vector<16x256xf32>
    %200 = arith.mulf %199, %155 : vector<16x256xf32>
    %cst_74 = arith.constant 1.000000e+00 : f32
    %201 = vector.broadcast %cst_74 : f32 to vector<16x256xf32>
    %202 = arith.addf %200, %201 : vector<16x256xf32>
    %203 = arith.divf %180, %202 : vector<16x256xf32>
    %cst_75 = arith.constant 6.500000e+00 : f32
    %204 = vector.broadcast %cst_75 : f32 to vector<16x256xf32>
    %205 = arith.addf %153, %204 : vector<16x256xf32>
    %cst_76 = arith.constant 5.000000e-01 : f32
    %206 = vector.broadcast %cst_76 : f32 to vector<16x256xf32>
    %207 = arith.subf %153, %206 : vector<16x256xf32>
    %208 = math.log %205 : vector<16x256xf32>
    %209 = arith.mulf %207, %208 : vector<16x256xf32>
    %cst_77 = arith.constant 0.918938517 : f32
    %210 = vector.broadcast %cst_77 : f32 to vector<16x256xf32>
    %211 = arith.addf %210, %209 : vector<16x256xf32>
    %212 = arith.subf %211, %205 : vector<16x256xf32>
    %213 = math.log %203 : vector<16x256xf32>
    %214 = arith.addf %212, %213 : vector<16x256xf32>
    %215 = math.log %148 : vector<16x256xf32>
    %216 = arith.subf %214, %215 : vector<16x256xf32>
    %217 = arith.select %150, %216, %214 : vector<16x256xi1>, vector<16x256xf32>
    %218 = arith.subf %147, %217 : vector<16x256xf32>
    %219 = arith.addf %5, %0 : vector<16x256xf32>
    %220 = arith.subf %15, %8 : vector<16x256xf32>
    %221 = arith.mulf %219, %220 : vector<16x256xf32>
    %222 = arith.subf %8, %11 : vector<16x256xf32>
    %223 = arith.mulf %0, %222 : vector<16x256xf32>
    %224 = arith.addf %221, %223 : vector<16x256xf32>
    %225 = arith.addf %218, %224 : vector<16x256xf32>
    %cst_78 = arith.constant 0.000000e+00 : f32
    %226 = arith.cmpf one, %225, %225 : vector<16x256xf32>
    %227 = vector.broadcast %cst_78 : f32 to vector<16x256xf32>
    %228 = arith.select %226, %227, %225 : vector<16x256xi1>, vector<16x256xf32>
    %cst_79 = arith.constant 0x7F800000 : f32
    %229 = vector.broadcast %cst_79 : f32 to vector<16x256xf32>
    %230 = arith.cmpf oeq, %228, %229 : vector<16x256xf32>
    %cst_80 = arith.constant 3.40282347E+38 : f32
    %231 = vector.broadcast %cst_80 : f32 to vector<16x256xf32>
    %232 = arith.select %230, %231, %228 : vector<16x256xi1>, vector<16x256xf32>
    %cst_81 = arith.constant 0xFF800000 : f32
    %233 = vector.broadcast %cst_81 : f32 to vector<16x256xf32>
    %234 = arith.cmpf oeq, %232, %233 : vector<16x256xf32>
    %cst_82 = arith.constant -3.40282347E+38 : f32
    %235 = vector.broadcast %cst_82 : f32 to vector<16x256xf32>
    %236 = arith.select %234, %235, %232 : vector<16x256xi1>, vector<16x256xf32>
    %cst_83 = arith.constant 1.000000e+00 : f32
    %237 = vector.broadcast %cst_83 : f32 to vector<16x256xf32>
    %238 = arith.subf %237, %1 : vector<16x256xf32>
    %cst_84 = arith.constant 1.000000e-10 : f32
    %239 = vector.broadcast %cst_84 : f32 to vector<16x256xf32>
    %240 = arith.addf %238, %239 : vector<16x256xf32>
    %241 = math.log %240 : vector<16x256xf32>
    %242 = arith.subf %236, %241 : vector<16x256xf32>
    %243 = arith.subf %8, %15 : vector<16x256xf32>
    %244 = arith.mulf %5, %243 : vector<16x256xf32>
    %245 = math.exp %244 : vector<16x256xf32>
    %246 = arith.mulf %238, %245 : vector<16x256xf32>
    %247 = arith.addf %1, %246 : vector<16x256xf32>
    %cst_85 = arith.constant 1.000000e-10 : f32
    %248 = vector.broadcast %cst_85 : f32 to vector<16x256xf32>
    %249 = arith.addf %247, %248 : vector<16x256xf32>
    %250 = math.log %249 : vector<16x256xf32>
    %cst_86 = arith.constant 0.000000e+00 : f32
    %251 = vector.broadcast %cst_86 : f32 to vector<16x256xf32>
    %252 = arith.subf %251, %250 : vector<16x256xf32>
    %cst_87 = arith.constant 9.99999997E-7 : f32
    %253 = vector.broadcast %cst_87 : f32 to vector<16x256xf32>
    %254 = arith.cmpf olt, %0, %253 : vector<16x256xf32>
    %255 = arith.select %254, %252, %242 : vector<16x256xi1>, vector<16x256xf32>
    %cst_88 = arith.constant 0.000000e+00 : f32
    %256 = arith.cmpf one, %255, %255 : vector<16x256xf32>
    %257 = vector.broadcast %cst_88 : f32 to vector<16x256xf32>
    %258 = arith.select %256, %257, %255 : vector<16x256xi1>, vector<16x256xf32>
    %cst_89 = arith.constant 0x7F800000 : f32
    %259 = vector.broadcast %cst_89 : f32 to vector<16x256xf32>
    %260 = arith.cmpf oeq, %258, %259 : vector<16x256xf32>
    %cst_90 = arith.constant 3.40282347E+38 : f32
    %261 = vector.broadcast %cst_90 : f32 to vector<16x256xf32>
    %262 = arith.select %260, %261, %258 : vector<16x256xi1>, vector<16x256xf32>
    %cst_91 = arith.constant 0xFF800000 : f32
    %263 = vector.broadcast %cst_91 : f32 to vector<16x256xf32>
    %264 = arith.cmpf oeq, %262, %263 : vector<16x256xf32>
    %cst_92 = arith.constant -3.40282347E+38 : f32
    %265 = vector.broadcast %cst_92 : f32 to vector<16x256xf32>
    %266 = arith.select %264, %265, %262 : vector<16x256xi1>, vector<16x256xf32>
    %cst_93 = arith.constant 0.000000e+00 : f32
    %267 = vector.broadcast %cst_93 : f32 to vector<16x256xf32>
    %268 = arith.select %254, %266, %267 : vector<16x256xi1>, vector<16x256xf32>
    %269 = vector.shape_cast %268 : vector<16x256xf32> to vector<1x16x256xf32>
    %cst_94 = arith.constant dense<0.000000e+00> : vector<1xf32>
    %270 = vector.multi_reduction <add>, %269, %cst_94 [1, 2] : vector<1x16x256xf32> to vector<1xf32>
    %271 = vector.shape_cast %270 : vector<1xf32> to vector<1x1x1xf32>
    %272 = vector.extract %271[0, 0, 0] : f32 from vector<1x1x1xf32>
    %c0_95 = arith.constant 0 : index
    %c0_96 = arith.constant 0 : index
    %273 = memref.load %arg5[%c0_95, %c0_96] : memref<1x3xf32, #tpu.memory_space<smem>>
    memref.store %272, %arg5[%c0_95, %c0_96] : memref<1x3xf32, #tpu.memory_space<smem>>
    %cst_97 = arith.constant 1.000000e+00 : f32
    %cst_98 = arith.constant 0.000000e+00 : f32
    %274 = vector.broadcast %cst_97 : f32 to vector<16x256xf32>
    %275 = vector.broadcast %cst_98 : f32 to vector<16x256xf32>
    %276 = arith.select %254, %274, %275 : vector<16x256xi1>, vector<16x256xf32>
    %277 = vector.shape_cast %276 : vector<16x256xf32> to vector<1x16x256xf32>
    %cst_99 = arith.constant dense<0.000000e+00> : vector<1xf32>
    %278 = vector.multi_reduction <add>, %277, %cst_99 [1, 2] : vector<1x16x256xf32> to vector<1xf32>
    %279 = vector.shape_cast %278 : vector<1xf32> to vector<1x1x1xf32>
    %280 = vector.extract %279[0, 0, 0] : f32 from vector<1x1x1xf32>
    %c0_100 = arith.constant 0 : index
    %c1 = arith.constant 1 : index
    %281 = memref.load %arg5[%c0_100, %c1] : memref<1x3xf32, #tpu.memory_space<smem>>
    memref.store %280, %arg5[%c0_100, %c1] : memref<1x3xf32, #tpu.memory_space<smem>>
    %cst_101 = arith.constant 0.000000e+00 : f32
    %282 = vector.broadcast %cst_101 : f32 to vector<16x256xf32>
    %283 = arith.select %254, %282, %266 : vector<16x256xi1>, vector<16x256xf32>
    %284 = vector.shape_cast %283 : vector<16x256xf32> to vector<1x16x256xf32>
    %cst_102 = arith.constant dense<0.000000e+00> : vector<1xf32>
    %285 = vector.multi_reduction <add>, %284, %cst_102 [1, 2] : vector<1x16x256xf32> to vector<1xf32>
    %286 = vector.shape_cast %285 : vector<1xf32> to vector<1x1x1xf32>
    %287 = vector.extract %286[0, 0, 0] : f32 from vector<1x1x1xf32>
    %c0_103 = arith.constant 0 : index
    %c2 = arith.constant 2 : index
    %288 = memref.load %arg5[%c0_103, %c2] : memref<1x3xf32, #tpu.memory_space<smem>>
    memref.store %287, %arg5[%c0_103, %c2] : memref<1x3xf32, #tpu.memory_space<smem>>
    return
  }
  func.func @transform_0(%arg0: i32) -> (i32, i32) {
    %c0_i32 = arith.constant 0 : i32
    %c0_i32_0 = arith.constant 0 : i32
    return %arg0, %c0_i32 : i32, i32
  }
  func.func @transform_1(%arg0: i32) -> (i32, i32) {
    %c0_i32 = arith.constant 0 : i32
    %c0_i32_0 = arith.constant 0 : i32
    return %arg0, %c0_i32 : i32, i32
  }
  func.func @transform_2(%arg0: i32) -> (i32, i32) {
    %c0_i32 = arith.constant 0 : i32
    %c0_i32_0 = arith.constant 0 : i32
    return %arg0, %c0_i32 : i32, i32
  }
  func.func @transform_3(%arg0: i32) -> (i32, i32) {
    %c0_i32 = arith.constant 0 : i32
    %c0_i32_0 = arith.constant 0 : i32
    return %arg0, %c0_i32 : i32, i32
  }
  func.func @transform_4(%arg0: i32) -> (i32, i32) {
    %c0_i32 = arith.constant 0 : i32
    %c0_i32_0 = arith.constant 0 : i32
    return %arg0, %c0_i32 : i32, i32
  }
}

</mosaic_0001>

<llo_original>
// kernel: tpu_custom_call.1
$region0: #{tpu_custom_call.1}
  #allocation0 [shape = 'u32[]', space=smem, size = 0x4, offset = 0x4, fixed_abs, tag = 'smem constant byte address 0x4 - core index']
  #allocation1 [shape = 'u32[144,128]{1,0:T(1,128)}', space=vmem, size = 0x12000, scoped, tag = 'internal scratch']
  %s0 = inlined_call_operand.hbm [shape: f32[16,256], index: 0, kind: input, shape index: {}]
  %s1 = inlined_call_operand.hbm [shape: f32[16,256], index: 1, kind: input, shape index: {}]
  %s2 = inlined_call_operand.hbm [shape: f32[16,256], index: 2, kind: input, shape index: {}]
  %s3 = inlined_call_operand.hbm [shape: f32[16,256], index: 3, kind: input, shape index: {}]
  %s4 = inlined_call_operand.hbm [shape: f32[1,3], index: 4, kind: output, shape index: {}]
  %s5 = sld [smem:[#allocation0]]
  $region42: #{tpu_custom_call.1} parent=0
    _
  %s7 = ssub.s32 1, %s5
  %s8 = scalar_select 0, %s7, %s5
  $region1: #{tpu_custom_call.1} parent=0
    #allocation2 [shape = 'u8[16384]{0}', space=vmem, size = 0x4000, scoped, tag = 'input window, operand 0, single buffered']
    #allocation3 [shape = 's32[1]{0}', space=sflag, size = 0x4, scoped, tag = 'scoped memory for tpu_custom_call.1']
    #allocation4 [shape = 's32[1]{0}', space=sflag, size = 0x4, scoped, tag = 'scoped memory for tpu_custom_call.1']
    #allocation5 [shape = 'u8[16384]{0}', space=vmem, size = 0x4000, scoped, tag = 'input window, operand 1, single buffered']
    #allocation6 [shape = 's32[1]{0}', space=sflag, size = 0x4, scoped, tag = 'scoped memory for tpu_custom_call.1']
    #allocation7 [shape = 'u8[16384]{0}', space=vmem, size = 0x4000, scoped, tag = 'input window, operand 2, single buffered']
    #allocation8 [shape = 'u8[16384]{0}', space=vmem, size = 0x4000, scoped, tag = 'input window, operand 3, single buffered']
    #allocation9 [shape = 's32[1]{0}', space=sflag, size = 0x4, scoped, tag = 'scoped memory for tpu_custom_call.1']
    #allocation10 [shape = 'u8[512]{0}', space=smem, size = 0x200, scoped, tag = 'output window, operand 0, single buffered']
    %9 = vsyncpa [#allocation3], 0
    %10 = vsyncpa [#allocation6], 0
    %11 = vsyncpa [#allocation9], 0
    %12 = vsyncpa [#allocation4], 0
    // Predicated region
    $region2: #{tpu_custom_call.1} parent=1 // pred_check
      _
    $region3: #{tpu_custom_call.1} parent=1 // pred_check_branch
      %14 = sbr.rel (0) target = $region5
    $region4: #{tpu_custom_call.1} parent=1 // pred_region
      %s16 = ssub.s32 512, 512
      %17 = vsyncadd [#allocation3], %s16
      %s18 = sshll.u32 [#allocation2], 4
      %s19 = int_to_ptr.vmem [resolvable:$true] %s18
      %24 = dma.hbm_to_vmem [thread:$0]  %s0, 512, %s19, [#allocation3], 256, 256, 16
    $region5: #{tpu_custom_call.1} parent=1 // pred_fallthru
      _
    // Predicated region
    $region6: #{tpu_custom_call.1} parent=1 // pred_check
      _
    $region7: #{tpu_custom_call.1} parent=1 // pred_check_branch
      %26 = sbr.rel (0) target = $region9
    $region8: #{tpu_custom_call.1} parent=1 // pred_region
      %s28 = ssub.s32 512, 512
      %29 = vsyncadd [#allocation6], %s28
      %s30 = sshll.u32 [#allocation5], 4
      %s31 = int_to_ptr.vmem [resolvable:$true] %s30
      %36 = dma.hbm_to_vmem [thread:$0]  %s1, 512, %s31, [#allocation6], 256, 256, 16
    $region9: #{tpu_custom_call.1} parent=1 // pred_fallthru
      _
    // Predicated region
    $region10: #{tpu_custom_call.1} parent=1 // pred_check
      _
    $region11: #{tpu_custom_call.1} parent=1 // pred_check_branch
      %38 = sbr.rel (0) target = $region13
    $region12: #{tpu_custom_call.1} parent=1 // pred_region
      %s40 = ssub.s32 512, 512
      %41 = vsyncadd [#allocation6], %s40
      %s42 = sshll.u32 [#allocation7], 4
      %s43 = int_to_ptr.vmem [resolvable:$true] %s42
      %48 = dma.hbm_to_vmem [thread:$0]  %s2, 512, %s43, [#allocation6], 256, 256, 16
    $region13: #{tpu_custom_call.1} parent=1 // pred_fallthru
      _
    // Predicated region
    $region14: #{tpu_custom_call.1} parent=1 // pred_check
      _
    $region15: #{tpu_custom_call.1} parent=1 // pred_check_branch
      %50 = sbr.rel (0) target = $region17
    $region16: #{tpu_custom_call.1} parent=1 // pred_region
      %s52 = ssub.s32 512, 512
      %53 = vsyncadd [#allocation9], %s52
      %s54 = sshll.u32 [#allocation8], 4
      %s55 = int_to_ptr.vmem [resolvable:$true] %s54
      %60 = dma.hbm_to_vmem [thread:$0]  %s3, 512, %s55, [#allocation9], 256, 256, 16
    $region17: #{tpu_custom_call.1} parent=1 // pred_fallthru
      _
    // Predicated region
    $region18: #{tpu_custom_call.1} parent=1 // pred_check
      _
    $region19: #{tpu_custom_call.1} parent=1 // pred_check_branch
      %62 = sbr.rel (0) target = $region21
    $region20: #{tpu_custom_call.1} parent=1 // pred_region
      %63 = dma.done [#allocation3], 512
    $region21: #{tpu_custom_call.1} parent=1 // pred_fallthru
      _
    // Predicated region
    $region22: #{tpu_custom_call.1} parent=1 // pred_check
      _
    $region23: #{tpu_custom_call.1} parent=1 // pred_check_branch
      %65 = sbr.rel (0) target = $region25
    $region24: #{tpu_custom_call.1} parent=1 // pred_region
      %66 = dma.done [#allocation6], 512
    $region25: #{tpu_custom_call.1} parent=1 // pred_fallthru
      _
    // Predicated region
    $region26: #{tpu_custom_call.1} parent=1 // pred_check
      _
    $region27: #{tpu_custom_call.1} parent=1 // pred_check_branch
      %68 = sbr.rel (0) target = $region29
    $region28: #{tpu_custom_call.1} parent=1 // pred_region
      %69 = dma.done [#allocation6], 512
    $region29: #{tpu_custom_call.1} parent=1 // pred_fallthru
      _
    // Predicated region
    $region30: #{tpu_custom_call.1} parent=1 // pred_check
      _
    $region31: #{tpu_custom_call.1} parent=1 // pred_check_branch
      %71 = sbr.rel (0) target = $region33
    $region32: #{tpu_custom_call.1} parent=1 // pred_region
      %72 = dma.done [#allocation9], 512
    $region33: #{tpu_custom_call.1} parent=1 // pred_fallthru
      _
    %v73 = vld [vmem:[#allocation2] sm:$0xff]
    %v74 = vld [vmem:[#allocation2 + $0x8] sm:$0xff]
    %v75 = vld [vmem:[#allocation2 + $0x10] sm:$0xff]
    %v76 = vld [vmem:[#allocation2 + $0x18] sm:$0xff]
    %v77 = vld [vmem:[#allocation5] sm:$0xff]
    %v78 = vld [vmem:[#allocation5 + $0x8] sm:$0xff]
    %v79 = vld [vmem:[#allocation5 + $0x10] sm:$0xff]
    %v80 = vld [vmem:[#allocation5 + $0x18] sm:$0xff]
    %v81 = vld [vmem:[#allocation7] sm:$0xff]
    %v82 = vld [vmem:[#allocation7 + $0x8] sm:$0xff]
    %v83 = vld [vmem:[#allocation7 + $0x10] sm:$0xff]
    %v84 = vld [vmem:[#allocation7 + $0x18] sm:$0xff]
    %v85 = vld [vmem:[#allocation8] sm:$0xff]
    %v86 = vld [vmem:[#allocation8 + $0x8] sm:$0xff]
    %v87 = vld [vmem:[#allocation8 + $0x10] sm:$0xff]
    %v88 = vld [vmem:[#allocation8 + $0x18] sm:$0xff]
    %v89 = vmin.f32 %v85, 1000000.0
    %v90 = vmin.f32 %v86, 1000000.0
    %v91 = vmin.f32 %v87, 1000000.0
    %v92 = vmin.f32 %v88, 1000000.0
    %v93 = vadd.f32 %v89, 1e-10
    %v94 = vadd.f32 %v90, 1e-10
    %v95 = vadd.f32 %v91, 1e-10
    %v96 = vadd.f32 %v92, 1e-10
    %v97 = vlog2.pop %v93
    %v98 = vmul.f32 %v97, 0.6931472
    %v99 = vlog2.pop %v94
    %v100 = vmul.f32 %v99, 0.6931472
    %v101 = vlog2.pop %v95
    %v102 = vmul.f32 %v101, 0.6931472
    %v103 = vlog2.pop %v96
    %v104 = vmul.f32 %v103, 0.6931472
    %v105 = vadd.f32 %v81, 1e-10
    %v106 = vadd.f32 %v82, 1e-10
    %v107 = vadd.f32 %v83, 1e-10
    %v108 = vadd.f32 %v84, 1e-10
    %v109 = vlog2.pop %v105
    %v110 = vmul.f32 %v109, 0.6931472
    %v111 = vlog2.pop %v106
    %v112 = vmul.f32 %v111, 0.6931472
    %v113 = vlog2.pop %v107
    %v114 = vmul.f32 %v113, 0.6931472
    %v115 = vlog2.pop %v108
    %v116 = vmul.f32 %v115, 0.6931472
    %v117 = vadd.f32 %v89, %v81
    %v118 = vadd.f32 %v90, %v82
    %v119 = vadd.f32 %v91, %v83
    %v120 = vadd.f32 %v92, %v84
    %v121 = vadd.f32 %v117, 1e-10
    %v122 = vadd.f32 %v118, 1e-10
    %v123 = vadd.f32 %v119, 1e-10
    %v124 = vadd.f32 %v120, 1e-10
    %v125 = vlog2.pop %v121
    %v126 = vmul.f32 %v125, 0.6931472
    %v127 = vlog2.pop %v122
    %v128 = vmul.f32 %v127, 0.6931472
    %v129 = vlog2.pop %v123
    %v130 = vmul.f32 %v129, 0.6931472
    %v131 = vlog2.pop %v124
    %v132 = vmul.f32 %v131, 0.6931472
    %vm133 = vcmp.lt.f32.partialorder %v93, 0.5
    %vm134 = vcmp.lt.f32.partialorder %v94, 0.5
    %vm135 = vcmp.lt.f32.partialorder %v95, 0.5
    %vm136 = vcmp.lt.f32.partialorder %v96, 0.5
    %v137 = vadd.f32 %v93, 1.0
    %v138 = vadd.f32 %v94, 1.0
    %v139 = vadd.f32 %v95, 1.0
    %v140 = vadd.f32 %v96, 1.0
    %v141 = vsel %vm133, %v137, %v93
    %v142 = vsel %vm134, %v138, %v94
    %v143 = vsel %vm135, %v139, %v95
    %v144 = vsel %vm136, %v140, %v96
    %v145 = vrcp.pop %v141
    %v146 = vmul.f32 1.0, %v145
    %v147 = vrcp.pop %v142
    %v148 = vmul.f32 1.0, %v147
    %v149 = vrcp.pop %v143
    %v150 = vmul.f32 1.0, %v149
    %v151 = vrcp.pop %v144
    %v152 = vmul.f32 1.0, %v151
    %v153 = vmul.f32 %v146, 3409662.8
    %v154 = vmul.f32 %v148, 3409662.8
    %v155 = vmul.f32 %v150, 3409662.8
    %v156 = vmul.f32 %v152, 3409662.8
    %v157 = vadd.f32 %v153, 4162388.0
    %v158 = vadd.f32 %v154, 4162388.0
    %v159 = vadd.f32 %v155, 4162388.0
    %v160 = vadd.f32 %v156, 4162388.0
    %v161 = vmul.f32 %v157, %v146
    %v162 = vmul.f32 %v158, %v148
    %v163 = vmul.f32 %v159, %v150
    %v164 = vmul.f32 %v160, %v152
    %v165 = vadd.f32 %v161, 2222880.5
    %v166 = vadd.f32 %v162, 2222880.5
    %v167 = vadd.f32 %v163, 2222880.5
    %v168 = vadd.f32 %v164, 2222880.5
    %v169 = vmul.f32 %v165, %v146
    %v170 = vmul.f32 %v166, %v148
    %v171 = vmul.f32 %v167, %v150
    %v172 = vmul.f32 %v168, %v152
    %v173 = vadd.f32 %v169, 678289.7
    %v174 = vadd.f32 %v170, 678289.7
    %v175 = vadd.f32 %v171, 678289.7
    %v176 = vadd.f32 %v172, 678289.7
    %v177 = vmul.f32 %v173, %v146
    %v178 = vmul.f32 %v174, %v148
    %v179 = vmul.f32 %v175, %v150
    %v180 = vmul.f32 %v176, %v152
    %v181 = vadd.f32 %v177, 129347.26
    %v182 = vadd.f32 %v178, 129347.26
    %v183 = vadd.f32 %v179, 129347.26
    %v184 = vadd.f32 %v180, 129347.26
    %v185 = vmul.f32 %v181, %v146
    %v186 = vmul.f32 %v182, %v148
    %v187 = vmul.f32 %v183, %v150
    %v188 = vmul.f32 %v184, %v152
    %v189 = vadd.f32 %v185, 15784.881
    %v190 = vadd.f32 %v186, 15784.881
    %v191 = vadd.f32 %v187, 15784.881
    %v192 = vadd.f32 %v188, 15784.881
    %v193 = vmul.f32 %v189, %v146
    %v194 = vmul.f32 %v190, %v148
    %v195 = vmul.f32 %v191, %v150
    %v196 = vmul.f32 %v192, %v152
    %v197 = vadd.f32 %v193, 1203.8342
    %v198 = vadd.f32 %v194, 1203.8342
    %v199 = vadd.f32 %v195, 1203.8342
    %v200 = vadd.f32 %v196, 1203.8342
    %v201 = vmul.f32 %v197, %v146
    %v202 = vmul.f32 %v198, %v148
    %v203 = vmul.f32 %v199, %v150
    %v204 = vmul.f32 %v200, %v152
    %v205 = vadd.f32 %v201, 52.458332
    %v206 = vadd.f32 %v202, 52.458332
    %v207 = vadd.f32 %v203, 52.458332
    %v208 = vadd.f32 %v204, 52.458332
    %v209 = vmul.f32 %v205, %v146
    %v210 = vmul.f32 %v206, %v148
    %v211 = vmul.f32 %v207, %v150
    %v212 = vmul.f32 %v208, %v152
    %v213 = vadd.f32 %v209, 1.0
    %v214 = vadd.f32 %v210, 1.0
    %v215 = vadd.f32 %v211, 1.0
    %v216 = vadd.f32 %v212, 1.0
    %v217 = vmul.f32 %v146, 5040.0
    %v218 = vmul.f32 %v148, 5040.0
    %v219 = vmul.f32 %v150, 5040.0
    %v220 = vmul.f32 %v152, 5040.0
    %v221 = vadd.f32 %v217, 13068.0
    %v222 = vadd.f32 %v218, 13068.0
    %v223 = vadd.f32 %v219, 13068.0
    %v224 = vadd.f32 %v220, 13068.0
    %v225 = vmul.f32 %v221, %v146
    %v226 = vmul.f32 %v222, %v148
    %v227 = vmul.f32 %v223, %v150
    %v228 = vmul.f32 %v224, %v152
    %v229 = vadd.f32 %v225, 13132.0
    %v230 = vadd.f32 %v226, 13132.0
    %v231 = vadd.f32 %v227, 13132.0
    %v232 = vadd.f32 %v228, 13132.0
    %v233 = vmul.f32 %v229, %v146
    %v234 = vmul.f32 %v230, %v148
    %v235 = vmul.f32 %v231, %v150
    %v236 = vmul.f32 %v232, %v152
    %v237 = vadd.f32 %v233, 6769.0
    %v238 = vadd.f32 %v234, 6769.0
    %v239 = vadd.f32 %v235, 6769.0
    %v240 = vadd.f32 %v236, 6769.0
    %v241 = vmul.f32 %v237, %v146
    %v242 = vmul.f32 %v238, %v148
    %v243 = vmul.f32 %v239, %v150
    %v244 = vmul.f32 %v240, %v152
    %v245 = vadd.f32 %v241, 1960.0
    %v246 = vadd.f32 %v242, 1960.0
    %v247 = vadd.f32 %v243, 1960.0
    %v248 = vadd.f32 %v244, 1960.0
    %v249 = vmul.f32 %v245, %v146
    %v250 = vmul.f32 %v246, %v148
    %v251 = vmul.f32 %v247, %v150
    %v252 = vmul.f32 %v248, %v152
    %v253 = vadd.f32 %v249, 322.0
    %v254 = vadd.f32 %v250, 322.0
    %v255 = vadd.f32 %v251, 322.0
    %v256 = vadd.f32 %v252, 322.0
    %v257 = vmul.f32 %v253, %v146
    %v258 = vmul.f32 %v254, %v148
    %v259 = vmul.f32 %v255, %v150
    %v260 = vmul.f32 %v256, %v152
    %v261 = vadd.f32 %v257, 28.0
    %v262 = vadd.f32 %v258, 28.0
    %v263 = vadd.f32 %v259, 28.0
    %v264 = vadd.f32 %v260, 28.0
    %v265 = vmul.f32 %v261, %v146
    %v266 = vmul.f32 %v262, %v148
    %v267 = vmul.f32 %v263, %v150
    %v268 = vmul.f32 %v264, %v152
    %v269 = vadd.f32 %v265, 1.0
    %v270 = vadd.f32 %v266, 1.0
    %v271 = vadd.f32 %v267, 1.0
    %v272 = vadd.f32 %v268, 1.0
    %v273 = vrcp.pop %v269
    %v274 = vmul.f32 %v213, %v273
    %v275 = vrcp.pop %v270
    %v276 = vmul.f32 %v214, %v275
    %v277 = vrcp.pop %v271
    %v278 = vmul.f32 %v215, %v277
    %v279 = vrcp.pop %v272
    %v280 = vmul.f32 %v216, %v279
    %v281 = vadd.f32 %v141, 6.5
    %v282 = vadd.f32 %v142, 6.5
    %v283 = vadd.f32 %v143, 6.5
    %v284 = vadd.f32 %v144, 6.5
    %v285 = vsub.f32 %v141, 0.5
    %v286 = vsub.f32 %v142, 0.5
    %v287 = vsub.f32 %v143, 0.5
    %v288 = vsub.f32 %v144, 0.5
    %v289 = vlog2.pop %v281
    %v290 = vmul.f32 %v289, 0.6931472
    %v291 = vlog2.pop %v282
    %v292 = vmul.f32 %v291, 0.6931472
    %v293 = vlog2.pop %v283
    %v294 = vmul.f32 %v293, 0.6931472
    %v295 = vlog2.pop %v284
    %v296 = vmul.f32 %v295, 0.6931472
    %v297 = vmul.f32 %v285, %v290
    %v298 = vmul.f32 %v286, %v292
    %v299 = vmul.f32 %v287, %v294
    %v300 = vmul.f32 %v288, %v296
    %v301 = vadd.f32 %v297, 0.9189385
    %v302 = vadd.f32 %v298, 0.9189385
    %v303 = vadd.f32 %v299, 0.9189385
    %v304 = vadd.f32 %v300, 0.9189385
    %v305 = vsub.f32 %v301, %v281
    %v306 = vsub.f32 %v302, %v282
    %v307 = vsub.f32 %v303, %v283
    %v308 = vsub.f32 %v304, %v284
    %v309 = vlog2.pop %v274
    %v310 = vmul.f32 %v309, 0.6931472
    %v311 = vlog2.pop %v276
    %v312 = vmul.f32 %v311, 0.6931472
    %v313 = vlog2.pop %v278
    %v314 = vmul.f32 %v313, 0.6931472
    %v315 = vlog2.pop %v280
    %v316 = vmul.f32 %v315, 0.6931472
    %v317 = vadd.f32 %v305, %v310
    %v318 = vadd.f32 %v306, %v312
    %v319 = vadd.f32 %v307, %v314
    %v320 = vadd.f32 %v308, %v316
    %v321 = vsub.f32 %v317, %v98
    %v322 = vsub.f32 %v318, %v100
    %v323 = vsub.f32 %v319, %v102
    %v324 = vsub.f32 %v320, %v104
    %v325 = vsel %vm133, %v321, %v317
    %v326 = vsel %vm134, %v322, %v318
    %v327 = vsel %vm135, %v323, %v319
    %v328 = vsel %vm136, %v324, %v320
    %v329 = vadd.f32 %v73, 1.0
    %v330 = vadd.f32 %v74, 1.0
    %v331 = vadd.f32 %v75, 1.0
    %v332 = vadd.f32 %v76, 1.0
    %v333 = vrcp.pop %v329
    %v334 = vmul.f32 1.0, %v333
    %v335 = vrcp.pop %v330
    %v336 = vmul.f32 1.0, %v335
    %v337 = vrcp.pop %v331
    %v338 = vmul.f32 1.0, %v337
    %v339 = vrcp.pop %v332
    %v340 = vmul.f32 1.0, %v339
    %v341 = vmul.f32 %v334, 3409662.8
    %v342 = vmul.f32 %v336, 3409662.8
    %v343 = vmul.f32 %v338, 3409662.8
    %v344 = vmul.f32 %v340, 3409662.8
    %v345 = vadd.f32 %v341, 4162388.0
    %v346 = vadd.f32 %v342, 4162388.0
    %v347 = vadd.f32 %v343, 4162388.0
    %v348 = vadd.f32 %v344, 4162388.0
    %v349 = vmul.f32 %v345, %v334
    %v350 = vmul.f32 %v346, %v336
    %v351 = vmul.f32 %v347, %v338
    %v352 = vmul.f32 %v348, %v340
    %v353 = vadd.f32 %v349, 2222880.5
    %v354 = vadd.f32 %v350, 2222880.5
    %v355 = vadd.f32 %v351, 2222880.5
    %v356 = vadd.f32 %v352, 2222880.5
    %v357 = vmul.f32 %v353, %v334
    %v358 = vmul.f32 %v354, %v336
    %v359 = vmul.f32 %v355, %v338
    %v360 = vmul.f32 %v356, %v340
    %v361 = vadd.f32 %v357, 678289.7
    %v362 = vadd.f32 %v358, 678289.7
    %v363 = vadd.f32 %v359, 678289.7
    %v364 = vadd.f32 %v360, 678289.7
    %v365 = vmul.f32 %v361, %v334
    %v366 = vmul.f32 %v362, %v336
    %v367 = vmul.f32 %v363, %v338
    %v368 = vmul.f32 %v364, %v340
    %v369 = vadd.f32 %v365, 129347.26
    %v370 = vadd.f32 %v366, 129347.26
    %v371 = vadd.f32 %v367, 129347.26
    %v372 = vadd.f32 %v368, 129347.26
    %v373 = vmul.f32 %v369, %v334
    %v374 = vmul.f32 %v370, %v336
    %v375 = vmul.f32 %v371, %v338
    %v376 = vmul.f32 %v372, %v340
    %v377 = vadd.f32 %v373, 15784.881
    %v378 = vadd.f32 %v374, 15784.881
    %v379 = vadd.f32 %v375, 15784.881
    %v380 = vadd.f32 %v376, 15784.881
    %v381 = vmul.f32 %v377, %v334
    %v382 = vmul.f32 %v378, %v336
    %v383 = vmul.f32 %v379, %v338
    %v384 = vmul.f32 %v380, %v340
    %v385 = vadd.f32 %v381, 1203.8342
    %v386 = vadd.f32 %v382, 1203.8342
    %v387 = vadd.f32 %v383, 1203.8342
    %v388 = vadd.f32 %v384, 1203.8342
    %v389 = vmul.f32 %v385, %v334
    %v390 = vmul.f32 %v386, %v336
    %v391 = vmul.f32 %v387, %v338
    %v392 = vmul.f32 %v388, %v340
    %v393 = vadd.f32 %v389, 52.458332
    %v394 = vadd.f32 %v390, 52.458332
    %v395 = vadd.f32 %v391, 52.458332
    %v396 = vadd.f32 %v392, 52.458332
    %v397 = vmul.f32 %v393, %v334
    %v398 = vmul.f32 %v394, %v336
    %v399 = vmul.f32 %v395, %v338
    %v400 = vmul.f32 %v396, %v340
    %v401 = vadd.f32 %v397, 1.0
    %v402 = vadd.f32 %v398, 1.0
    %v403 = vadd.f32 %v399, 1.0
    %v404 = vadd.f32 %v400, 1.0
    %v405 = vmul.f32 %v334, 5040.0
    %v406 = vmul.f32 %v336, 5040.0
    %v407 = vmul.f32 %v338, 5040.0
    %v408 = vmul.f32 %v340, 5040.0
    %v409 = vadd.f32 %v405, 13068.0
    %v410 = vadd.f32 %v406, 13068.0
    %v411 = vadd.f32 %v407, 13068.0
    %v412 = vadd.f32 %v408, 13068.0
    %v413 = vmul.f32 %v409, %v334
    %v414 = vmul.f32 %v410, %v336
    %v415 = vmul.f32 %v411, %v338
    %v416 = vmul.f32 %v412, %v340
    %v417 = vadd.f32 %v413, 13132.0
    %v418 = vadd.f32 %v414, 13132.0
    %v419 = vadd.f32 %v415, 13132.0
    %v420 = vadd.f32 %v416, 13132.0
    %v421 = vmul.f32 %v417, %v334
    %v422 = vmul.f32 %v418, %v336
    %v423 = vmul.f32 %v419, %v338
    %v424 = vmul.f32 %v420, %v340
    %v425 = vadd.f32 %v421, 6769.0
    %v426 = vadd.f32 %v422, 6769.0
    %v427 = vadd.f32 %v423, 6769.0
    %v428 = vadd.f32 %v424, 6769.0
    %v429 = vmul.f32 %v425, %v334
    %v430 = vmul.f32 %v426, %v336
    %v431 = vmul.f32 %v427, %v338
    %v432 = vmul.f32 %v428, %v340
    %v433 = vadd.f32 %v429, 1960.0
    %v434 = vadd.f32 %v430, 1960.0
    %v435 = vadd.f32 %v431, 1960.0
    %v436 = vadd.f32 %v432, 1960.0
    %v437 = vmul.f32 %v433, %v334
    %v438 = vmul.f32 %v434, %v336
    %v439 = vmul.f32 %v435, %v338
    %v440 = vmul.f32 %v436, %v340
    %v441 = vadd.f32 %v437, 322.0
    %v442 = vadd.f32 %v438, 322.0
    %v443 = vadd.f32 %v439, 322.0
    %v444 = vadd.f32 %v440, 322.0
    %v445 = vmul.f32 %v441, %v334
    %v446 = vmul.f32 %v442, %v336
    %v447 = vmul.f32 %v443, %v338
    %v448 = vmul.f32 %v444, %v340
    %v449 = vadd.f32 %v445, 28.0
    %v450 = vadd.f32 %v446, 28.0
    %v451 = vadd.f32 %v447, 28.0
    %v452 = vadd.f32 %v448, 28.0
    %v453 = vmul.f32 %v449, %v334
    %v454 = vmul.f32 %v450, %v336
    %v455 = vmul.f32 %v451, %v338
    %v456 = vmul.f32 %v452, %v340
    %v457 = vadd.f32 %v453, 1.0
    %v458 = vadd.f32 %v454, 1.0
    %v459 = vadd.f32 %v455, 1.0
    %v460 = vadd.f32 %v456, 1.0
    %v461 = vrcp.pop %v457
    %v462 = vmul.f32 %v401, %v461
    %v463 = vrcp.pop %v458
    %v464 = vmul.f32 %v402, %v463
    %v465 = vrcp.pop %v459
    %v466 = vmul.f32 %v403, %v465
    %v467 = vrcp.pop %v460
    %v468 = vmul.f32 %v404, %v467
    %v469 = vadd.f32 %v329, 6.5
    %v470 = vadd.f32 %v330, 6.5
    %v471 = vadd.f32 %v331, 6.5
    %v472 = vadd.f32 %v332, 6.5
    %v473 = vsub.f32 %v329, 0.5
    %v474 = vsub.f32 %v330, 0.5
    %v475 = vsub.f32 %v331, 0.5
    %v476 = vsub.f32 %v332, 0.5
    %v477 = vlog2.pop %v469
    %v478 = vmul.f32 %v477, 0.6931472
    %v479 = vlog2.pop %v470
    %v480 = vmul.f32 %v479, 0.6931472
    %v481 = vlog2.pop %v471
    %v482 = vmul.f32 %v481, 0.6931472
    %v483 = vlog2.pop %v472
    %v484 = vmul.f32 %v483, 0.6931472
    %v485 = vmul.f32 %v473, %v478
    %v486 = vmul.f32 %v474, %v480
    %v487 = vmul.f32 %v475, %v482
    %v488 = vmul.f32 %v476, %v484
    %v489 = vadd.f32 %v485, 0.9189385
    %v490 = vadd.f32 %v486, 0.9189385
    %v491 = vadd.f32 %v487, 0.9189385
    %v492 = vadd.f32 %v488, 0.9189385
    %v493 = vsub.f32 %v489, %v469
    %v494 = vsub.f32 %v490, %v470
    %v495 = vsub.f32 %v491, %v471
    %v496 = vsub.f32 %v492, %v472
    %v497 = vlog2.pop %v462
    %v498 = vmul.f32 %v497, 0.6931472
    %v499 = vlog2.pop %v464
    %v500 = vmul.f32 %v499, 0.6931472
    %v501 = vlog2.pop %v466
    %v502 = vmul.f32 %v501, 0.6931472
    %v503 = vlog2.pop %v468
    %v504 = vmul.f32 %v503, 0.6931472
    %v505 = vadd.f32 %v493, %v498
    %v506 = vadd.f32 %v494, %v500
    %v507 = vadd.f32 %v495, %v502
    %v508 = vadd.f32 %v496, %v504
    %v509 = vadd.f32 %v325, %v505
    %v510 = vadd.f32 %v326, %v506
    %v511 = vadd.f32 %v327, %v507
    %v512 = vadd.f32 %v328, %v508
    %v513 = vadd.f32 %v73, %v93
    %v514 = vadd.f32 %v74, %v94
    %v515 = vadd.f32 %v75, %v95
    %v516 = vadd.f32 %v76, %v96
    %vm517 = vcmp.lt.f32.partialorder %v513, 0.5
    %vm518 = vcmp.lt.f32.partialorder %v514, 0.5
    %vm519 = vcmp.lt.f32.partialorder %v515, 0.5
    %vm520 = vcmp.lt.f32.partialorder %v516, 0.5
    %v521 = vadd.f32 %v513, 1.0
    %v522 = vadd.f32 %v514, 1.0
    %v523 = vadd.f32 %v515, 1.0
    %v524 = vadd.f32 %v516, 1.0
    %v525 = vsel %vm517, %v521, %v513
    %v526 = vsel %vm518, %v522, %v514
    %v527 = vsel %vm519, %v523, %v515
    %v528 = vsel %vm520, %v524, %v516
    %v529 = vrcp.pop %v525
    %v530 = vmul.f32 1.0, %v529
    %v531 = vrcp.pop %v526
    %v532 = vmul.f32 1.0, %v531
    %v533 = vrcp.pop %v527
    %v534 = vmul.f32 1.0, %v533
    %v535 = vrcp.pop %v528
    %v536 = vmul.f32 1.0, %v535
    %v537 = vmul.f32 %v530, 3409662.8
    %v538 = vmul.f32 %v532, 3409662.8
    %v539 = vmul.f32 %v534, 3409662.8
    %v540 = vmul.f32 %v536, 3409662.8
    %v541 = vadd.f32 %v537, 4162388.0
    %v542 = vadd.f32 %v538, 4162388.0
    %v543 = vadd.f32 %v539, 4162388.0
    %v544 = vadd.f32 %v540, 4162388.0
    %v545 = vmul.f32 %v541, %v530
    %v546 = vmul.f32 %v542, %v532
    %v547 = vmul.f32 %v543, %v534
    %v548 = vmul.f32 %v544, %v536
    %v549 = vadd.f32 %v545, 2222880.5
    %v550 = vadd.f32 %v546, 2222880.5
    %v551 = vadd.f32 %v547, 2222880.5
    %v552 = vadd.f32 %v548, 2222880.5
    %v553 = vmul.f32 %v549, %v530
    %v554 = vmul.f32 %v550, %v532
    %v555 = vmul.f32 %v551, %v534
    %v556 = vmul.f32 %v552, %v536
    %v557 = vadd.f32 %v553, 678289.7
    %v558 = vadd.f32 %v554, 678289.7
    %v559 = vadd.f32 %v555, 678289.7
    %v560 = vadd.f32 %v556, 678289.7
    %v561 = vmul.f32 %v557, %v530
    %v562 = vmul.f32 %v558, %v532
    %v563 = vmul.f32 %v559, %v534
    %v564 = vmul.f32 %v560, %v536
    %v565 = vadd.f32 %v561, 129347.26
    %v566 = vadd.f32 %v562, 129347.26
    %v567 = vadd.f32 %v563, 129347.26
    %v568 = vadd.f32 %v564, 129347.26
    %v569 = vmul.f32 %v565, %v530
    %v570 = vmul.f32 %v566, %v532
    %v571 = vmul.f32 %v567, %v534
    %v572 = vmul.f32 %v568, %v536
    %v573 = vadd.f32 %v569, 15784.881
    %v574 = vadd.f32 %v570, 15784.881
    %v575 = vadd.f32 %v571, 15784.881
    %v576 = vadd.f32 %v572, 15784.881
    %v577 = vmul.f32 %v573, %v530
    %v578 = vmul.f32 %v574, %v532
    %v579 = vmul.f32 %v575, %v534
    %v580 = vmul.f32 %v576, %v536
    %v581 = vadd.f32 %v577, 1203.8342
    %v582 = vadd.f32 %v578, 1203.8342
    %v583 = vadd.f32 %v579, 1203.8342
    %v584 = vadd.f32 %v580, 1203.8342
    %v585 = vmul.f32 %v581, %v530
    %v586 = vmul.f32 %v582, %v532
    %v587 = vmul.f32 %v583, %v534
    %v588 = vmul.f32 %v584, %v536
    %v589 = vadd.f32 %v585, 52.458332
    %v590 = vadd.f32 %v586, 52.458332
    %v591 = vadd.f32 %v587, 52.458332
    %v592 = vadd.f32 %v588, 52.458332
    %v593 = vmul.f32 %v589, %v530
    %v594 = vmul.f32 %v590, %v532
    %v595 = vmul.f32 %v591, %v534
    %v596 = vmul.f32 %v592, %v536
    %v597 = vadd.f32 %v593, 1.0
    %v598 = vadd.f32 %v594, 1.0
    %v599 = vadd.f32 %v595, 1.0
    %v600 = vadd.f32 %v596, 1.0
    %v601 = vmul.f32 %v530, 5040.0
    %v602 = vmul.f32 %v532, 5040.0
    %v603 = vmul.f32 %v534, 5040.0
    %v604 = vmul.f32 %v536, 5040.0
    %v605 = vadd.f32 %v601, 13068.0
    %v606 = vadd.f32 %v602, 13068.0
    %v607 = vadd.f32 %v603, 13068.0
    %v608 = vadd.f32 %v604, 13068.0
    %v609 = vmul.f32 %v605, %v530
    %v610 = vmul.f32 %v606, %v532
    %v611 = vmul.f32 %v607, %v534
    %v612 = vmul.f32 %v608, %v536
    %v613 = vadd.f32 %v609, 13132.0
    %v614 = vadd.f32 %v610, 13132.0
    %v615 = vadd.f32 %v611, 13132.0
    %v616 = vadd.f32 %v612, 13132.0
    %v617 = vmul.f32 %v613, %v530
    %v618 = vmul.f32 %v614, %v532
    %v619 = vmul.f32 %v615, %v534
    %v620 = vmul.f32 %v616, %v536
    %v621 = vadd.f32 %v617, 6769.0
    %v622 = vadd.f32 %v618, 6769.0
    %v623 = vadd.f32 %v619, 6769.0
    %v624 = vadd.f32 %v620, 6769.0
    %v625 = vmul.f32 %v621, %v530
    %v626 = vmul.f32 %v622, %v532
    %v627 = vmul.f32 %v623, %v534
    %v628 = vmul.f32 %v624, %v536
    %v629 = vadd.f32 %v625, 1960.0
    %v630 = vadd.f32 %v626, 1960.0
    %v631 = vadd.f32 %v627, 1960.0
    %v632 = vadd.f32 %v628, 1960.0
    %v633 = vmul.f32 %v629, %v530
    %v634 = vmul.f32 %v630, %v532
    %v635 = vmul.f32 %v631, %v534
    %v636 = vmul.f32 %v632, %v536
    %v637 = vadd.f32 %v633, 322.0
    %v638 = vadd.f32 %v634, 322.0
    %v639 = vadd.f32 %v635, 322.0
    %v640 = vadd.f32 %v636, 322.0
    %v641 = vmul.f32 %v637, %v530
    %v642 = vmul.f32 %v638, %v532
    %v643 = vmul.f32 %v639, %v534
    %v644 = vmul.f32 %v640, %v536
    %v645 = vadd.f32 %v641, 28.0
    %v646 = vadd.f32 %v642, 28.0
    %v647 = vadd.f32 %v643, 28.0
    %v648 = vadd.f32 %v644, 28.0
    %v649 = vmul.f32 %v645, %v530
    %v650 = vmul.f32 %v646, %v532
    %v651 = vmul.f32 %v647, %v534
    %v652 = vmul.f32 %v648, %v536
    %v653 = vadd.f32 %v649, 1.0
    %v654 = vadd.f32 %v650, 1.0
    %v655 = vadd.f32 %v651, 1.0
    %v656 = vadd.f32 %v652, 1.0
    %v657 = vrcp.pop %v653
    %v658 = vmul.f32 %v597, %v657
    %v659 = vrcp.pop %v654
    %v660 = vmul.f32 %v598, %v659
    %v661 = vrcp.pop %v655
    %v662 = vmul.f32 %v599, %v661
    %v663 = vrcp.pop %v656
    %v664 = vmul.f32 %v600, %v663
    %v665 = vadd.f32 %v525, 6.5
    %v666 = vadd.f32 %v526, 6.5
    %v667 = vadd.f32 %v527, 6.5
    %v668 = vadd.f32 %v528, 6.5
    %v669 = vsub.f32 %v525, 0.5
    %v670 = vsub.f32 %v526, 0.5
    %v671 = vsub.f32 %v527, 0.5
    %v672 = vsub.f32 %v528, 0.5
    %v673 = vlog2.pop %v665
    %v674 = vmul.f32 %v673, 0.6931472
    %v675 = vlog2.pop %v666
    %v676 = vmul.f32 %v675, 0.6931472
    %v677 = vlog2.pop %v667
    %v678 = vmul.f32 %v677, 0.6931472
    %v679 = vlog2.pop %v668
    %v680 = vmul.f32 %v679, 0.6931472
    %v681 = vmul.f32 %v669, %v674
    %v682 = vmul.f32 %v670, %v676
    %v683 = vmul.f32 %v671, %v678
    %v684 = vmul.f32 %v672, %v680
    %v685 = vadd.f32 %v681, 0.9189385
    %v686 = vadd.f32 %v682, 0.9189385
    %v687 = vadd.f32 %v683, 0.9189385
    %v688 = vadd.f32 %v684, 0.9189385
    %v689 = vsub.f32 %v685, %v665
    %v690 = vsub.f32 %v686, %v666
    %v691 = vsub.f32 %v687, %v667
    %v692 = vsub.f32 %v688, %v668
    %v693 = vlog2.pop %v658
    %v694 = vmul.f32 %v693, 0.6931472
    %v695 = vlog2.pop %v660
    %v696 = vmul.f32 %v695, 0.6931472
    %v697 = vlog2.pop %v662
    %v698 = vmul.f32 %v697, 0.6931472
    %v699 = vlog2.pop %v664
    %v700 = vmul.f32 %v699, 0.6931472
    %v701 = vadd.f32 %v689, %v694
    %v702 = vadd.f32 %v690, %v696
    %v703 = vadd.f32 %v691, %v698
    %v704 = vadd.f32 %v692, %v700
    %v705 = vlog2.pop %v513
    %v706 = vmul.f32 %v705, 0.6931472
    %v707 = vlog2.pop %v514
    %v708 = vmul.f32 %v707, 0.6931472
    %v709 = vlog2.pop %v515
    %v710 = vmul.f32 %v709, 0.6931472
    %v711 = vlog2.pop %v516
    %v712 = vmul.f32 %v711, 0.6931472
    %v713 = vsub.f32 %v701, %v706
    %v714 = vsub.f32 %v702, %v708
    %v715 = vsub.f32 %v703, %v710
    %v716 = vsub.f32 %v704, %v712
    %v717 = vsel %vm517, %v713, %v701
    %v718 = vsel %vm518, %v714, %v702
    %v719 = vsel %vm519, %v715, %v703
    %v720 = vsel %vm520, %v716, %v704
    %v721 = vsub.f32 %v509, %v717
    %v722 = vsub.f32 %v510, %v718
    %v723 = vsub.f32 %v511, %v719
    %v724 = vsub.f32 %v512, %v720
    %v725 = vadd.f32 %v89, %v73
    %v726 = vadd.f32 %v90, %v74
    %v727 = vadd.f32 %v91, %v75
    %v728 = vadd.f32 %v92, %v76
    %v729 = vsub.f32 %v126, %v98
    %v730 = vsub.f32 %v128, %v100
    %v731 = vsub.f32 %v130, %v102
    %v732 = vsub.f32 %v132, %v104
    %v733 = vmul.f32 %v725, %v729
    %v734 = vmul.f32 %v726, %v730
    %v735 = vmul.f32 %v727, %v731
    %v736 = vmul.f32 %v728, %v732
    %v737 = vsub.f32 %v98, %v110
    %v738 = vsub.f32 %v100, %v112
    %v739 = vsub.f32 %v102, %v114
    %v740 = vsub.f32 %v104, %v116
    %v741 = vmul.f32 %v73, %v737
    %v742 = vmul.f32 %v74, %v738
    %v743 = vmul.f32 %v75, %v739
    %v744 = vmul.f32 %v76, %v740
    %v745 = vadd.f32 %v733, %v741
    %v746 = vadd.f32 %v734, %v742
    %v747 = vadd.f32 %v735, %v743
    %v748 = vadd.f32 %v736, %v744
    %v749 = vadd.f32 %v721, %v745
    %v750 = vadd.f32 %v722, %v746
    %v751 = vadd.f32 %v723, %v747
    %v752 = vadd.f32 %v724, %v748
    %vm753 = vcmp.ne.f32.partialorder %v749, %v749
    %vm754 = vcmp.ne.f32.partialorder %v750, %v750
    %vm755 = vcmp.ne.f32.partialorder %v751, %v751
    %vm756 = vcmp.ne.f32.partialorder %v752, %v752
    %v757 = vsel %vm753, 0.0, %v749
    %v758 = vsel %vm754, 0.0, %v750
    %v759 = vsel %vm755, 0.0, %v751
    %v760 = vsel %vm756, 0.0, %v752
    %vm761 = vcmp.eq.f32.partialorder %v757, inf
    %vm762 = vcmp.eq.f32.partialorder %v758, inf
    %vm763 = vcmp.eq.f32.partialorder %v759, inf
    %vm764 = vcmp.eq.f32.partialorder %v760, inf
    %v765 = vsel %vm761, 3.4028235e+38, %v757
    %v766 = vsel %vm762, 3.4028235e+38, %v758
    %v767 = vsel %vm763, 3.4028235e+38, %v759
    %v768 = vsel %vm764, 3.4028235e+38, %v760
    %vm769 = vcmp.eq.f32.partialorder %v765, -inf
    %vm770 = vcmp.eq.f32.partialorder %v766, -inf
    %vm771 = vcmp.eq.f32.partialorder %v767, -inf
    %vm772 = vcmp.eq.f32.partialorder %v768, -inf
    %v773 = vsel %vm769, -3.4028235e+38, %v765
    %v774 = vsel %vm770, -3.4028235e+38, %v766
    %v775 = vsel %vm771, -3.4028235e+38, %v767
    %v776 = vsel %vm772, -3.4028235e+38, %v768
    %v777 = vsub.f32 1.0, %v77
    %v778 = vsub.f32 1.0, %v78
    %v779 = vsub.f32 1.0, %v79
    %v780 = vsub.f32 1.0, %v80
    %v781 = vadd.f32 %v777, 1e-10
    %v782 = vadd.f32 %v778, 1e-10
    %v783 = vadd.f32 %v779, 1e-10
    %v784 = vadd.f32 %v780, 1e-10
    %v785 = vlog2.pop %v781
    %v786 = vmul.f32 %v785, 0.6931472
    %v787 = vlog2.pop %v782
    %v788 = vmul.f32 %v787, 0.6931472
    %v789 = vlog2.pop %v783
    %v790 = vmul.f32 %v789, 0.6931472
    %v791 = vlog2.pop %v784
    %v792 = vmul.f32 %v791, 0.6931472
    %v793 = vsub.f32 %v773, %v786
    %v794 = vsub.f32 %v774, %v788
    %v795 = vsub.f32 %v775, %v790
    %v796 = vsub.f32 %v776, %v792
    %v797 = vsub.f32 %v98, %v126
    %v798 = vsub.f32 %v100, %v128
    %v799 = vsub.f32 %v102, %v130
    %v800 = vsub.f32 %v104, %v132
    %v801 = vmul.f32 %v89, %v797
    %v802 = vmul.f32 %v90, %v798
    %v803 = vmul.f32 %v91, %v799
    %v804 = vmul.f32 %v92, %v800
    %v805 = vmul.f32 %v801, 1.442695
    %v806 = vpow.pop %v805
    %v807 = vmul.f32 %v802, 1.442695
    %v808 = vpow.pop %v807
    %v809 = vmul.f32 %v803, 1.442695
    %v810 = vpow.pop %v809
    %v811 = vmul.f32 %v804, 1.442695
    %v812 = vpow.pop %v811
    %v813 = vmul.f32 %v777, %v806
    %v814 = vmul.f32 %v778, %v808
    %v815 = vmul.f32 %v779, %v810
    %v816 = vmul.f32 %v780, %v812
    %v817 = vadd.f32 %v77, %v813
    %v818 = vadd.f32 %v78, %v814
    %v819 = vadd.f32 %v79, %v815
    %v820 = vadd.f32 %v80, %v816
    %v821 = vadd.f32 %v817, 1e-10
    %v822 = vadd.f32 %v818, 1e-10
    %v823 = vadd.f32 %v819, 1e-10
    %v824 = vadd.f32 %v820, 1e-10
    %v825 = vlog2.pop %v821
    %v826 = vmul.f32 %v825, 0.6931472
    %v827 = vlog2.pop %v822
    %v828 = vmul.f32 %v827, 0.6931472
    %v829 = vlog2.pop %v823
    %v830 = vmul.f32 %v829, 0.6931472
    %v831 = vlog2.pop %v824
    %v832 = vmul.f32 %v831, 0.6931472
    %v833 = vsub.f32 0.0, %v826
    %v834 = vsub.f32 0.0, %v828
    %v835 = vsub.f32 0.0, %v830
    %v836 = vsub.f32 0.0, %v832
    %vm837 = vcmp.lt.f32.partialorder %v73, 1e-06
    %vm838 = vcmp.lt.f32.partialorder %v74, 1e-06
    %vm839 = vcmp.lt.f32.partialorder %v75, 1e-06
    %vm840 = vcmp.lt.f32.partialorder %v76, 1e-06
    %v841 = vsel %vm837, %v833, %v793
    %v842 = vsel %vm838, %v834, %v794
    %v843 = vsel %vm839, %v835, %v795
    %v844 = vsel %vm840, %v836, %v796
    %vm845 = vcmp.ne.f32.partialorder %v841, %v841
    %vm846 = vcmp.ne.f32.partialorder %v842, %v842
    %vm847 = vcmp.ne.f32.partialorder %v843, %v843
    %vm848 = vcmp.ne.f32.partialorder %v844, %v844
    %v849 = vsel %vm845, 0.0, %v841
    %v850 = vsel %vm846, 0.0, %v842
    %v851 = vsel %vm847, 0.0, %v843
    %v852 = vsel %vm848, 0.0, %v844
    %vm853 = vcmp.eq.f32.partialorder %v849, inf
    %vm854 = vcmp.eq.f32.partialorder %v850, inf
    %vm855 = vcmp.eq.f32.partialorder %v851, inf
    %vm856 = vcmp.eq.f32.partialorder %v852, inf
    %v857 = vsel %vm853, 3.4028235e+38, %v849
    %v858 = vsel %vm854, 3.4028235e+38, %v850
    %v859 = vsel %vm855, 3.4028235e+38, %v851
    %v860 = vsel %vm856, 3.4028235e+38, %v852
    %vm861 = vcmp.eq.f32.partialorder %v857, -inf
    %vm862 = vcmp.eq.f32.partialorder %v858, -inf
    %vm863 = vcmp.eq.f32.partialorder %v859, -inf
    %vm864 = vcmp.eq.f32.partialorder %v860, -inf
    %v865 = vsel %vm861, -3.4028235e+38, %v857
    %v866 = vsel %vm862, -3.4028235e+38, %v858
    %v867 = vsel %vm863, -3.4028235e+38, %v859
    %v868 = vsel %vm864, -3.4028235e+38, %v860
    %v869 = vsel %vm837, %v865, 0.0
    %v870 = vsel %vm838, %v866, 0.0
    %v871 = vsel %vm839, %v867, 0.0
    %v872 = vsel %vm840, %v868, 0.0
    %v873 = vadd.f32 %v869, %v870
    %v874 = vadd.f32 %v873, %v871
    %v875 = vadd.f32 %v874, %v872
    %876 = vadd.xlane.f32.xlu0 %v875
    %v877 = vpop.xlane.xlu0 %876
    %v878 = vrot.slane %v877, 4
    %v879 = vadd.f32 %v877, %v878
    %v880 = vrot.slane %v879, 2
    %v881 = vadd.f32 %v879, %v880
    %v882 = vrot.slane %v881, 1
    %v883 = vadd.f32 %v881, %v882
    %s884 = vtos %v883
    %s885 = scalar_lea.smem [#allocation10], 0
    %886 = sst [smem:[%s885]] %s884
    %v887 = vsel %vm837, 1.0, 0.0
    %v888 = vsel %vm838, 1.0, 0.0
    %v889 = vsel %vm839, 1.0, 0.0
    %v890 = vsel %vm840, 1.0, 0.0
    %v891 = vadd.f32 %v887, %v888
    %v892 = vadd.f32 %v891, %v889
    %v893 = vadd.f32 %v892, %v890
    %894 = vadd.xlane.f32.xlu0 %v893
    %v895 = vpop.xlane.xlu0 %894
    %v896 = vrot.slane %v895, 4
    %v897 = vadd.f32 %v895, %v896
    %v898 = vrot.slane %v897, 2
    %v899 = vadd.f32 %v897, %v898
    %v900 = vrot.slane %v899, 1
    %v901 = vadd.f32 %v899, %v900
    %s902 = vtos %v901
    %s903 = scalar_lea.smem [#allocation10], 1
    %904 = sst [smem:[%s903]] %s902
    %v905 = vsel %vm837, 0.0, %v865
    %v906 = vsel %vm838, 0.0, %v866
    %v907 = vsel %vm839, 0.0, %v867
    %v908 = vsel %vm840, 0.0, %v868
    %v909 = vadd.f32 %v905, %v906
    %v910 = vadd.f32 %v909, %v907
    %v911 = vadd.f32 %v910, %v908
    %912 = vadd.xlane.f32.xlu0 %v911
    %v913 = vpop.xlane.xlu0 %912
    %v914 = vrot.slane %v913, 4
    %v915 = vadd.f32 %v913, %v914
    %v916 = vrot.slane %v915, 2
    %v917 = vadd.f32 %v915, %v916
    %v918 = vrot.slane %v917, 1
    %v919 = vadd.f32 %v917, %v918
    %s920 = vtos %v919
    %s921 = scalar_lea.smem [#allocation10], 2
    %922 = sst [smem:[%s921]] %s920
    // Predicated region
    $region34: #{tpu_custom_call.1} parent=1 // pred_check
      _
    $region35: #{tpu_custom_call.1} parent=1 // pred_check_branch
      %924 = sbr.rel (0) target = $region37
    $region36: #{tpu_custom_call.1} parent=1 // pred_region
      %s926 = ssub.s32 16, 16
      %927 = vsyncadd [#allocation4], %s926
      %930 = dma.smem_to_hbm [#allocation10], 16, %s4, [#allocation4]
    $region37: #{tpu_custom_call.1} parent=1 // pred_fallthru
      _
    // Predicated region
    $region38: #{tpu_custom_call.1} parent=1 // pred_check
      _
    $region39: #{tpu_custom_call.1} parent=1 // pred_check_branch
      %932 = sbr.rel (0) target = $region41
    $region40: #{tpu_custom_call.1} parent=1 // pred_region
      %933 = dma.done [#allocation4], 16
    $region41: #{tpu_custom_call.1} parent=1 // pred_fallthru
      _
    %934 = sfence
    %935 = vsyncpa [#allocation3], 1
    %936 = vsyncpa [#allocation6], 1
    %937 = vsyncpa [#allocation9], 1
    %938 = vsyncpa [#allocation4], 1

</llo_original>
